<compile_context>
chip_gen: v7x
topology: tpu7x:2x2x1
jax: 0.10.0
libtpu: 0.0.40
codegen_flags: <defaults>
</compile_context>

<pallas_src>
import jax
import jax.numpy as jnp
from jax import lax
from jax.experimental import pallas as pl
from jax.experimental.pallas import tpu as pltpu  # noqa: F401

# ---------------- module hyper-parameters ----------------
IN_CHANNELS = 4
OUT_CHANNELS = 8
KR = 2          # kernel_size
S = 2           # stride (kr == s, p == 0 -> non-overlapping transpose conv)
P = 0           # padding
DROP_OUT = 0.0  # -> nn.Identity()
BN_EPS = 1e-5

N, H, W = 2, 16, 16
HW = H * W                                                       # 256
HOUT, WOUT = (H - 1) * S - 2 * P + KR, (W - 1) * S - 2 * P + KR  # 32, 32
HWOUT = HOUT * WOUT                                              # 1024
KK = KR * KR                                                     # 4


# -------- fused Pallas kernel: ReLU + ConvTranspose2d contraction + BatchNorm2d --------
def _fused_upsample_kernel(x_ref, w_ref, g_ref, b_ref, o_ref):
    """x_ref: (N, Cin, H*W)            free row-major view of the NCHW activation
       w_ref: (KR*KR*Cout, Cin)        row r = (k*KR + l)*Cout + co
       g_ref, b_ref: (Cout, 1)         BatchNorm gamma / beta
       o_ref: (KR*KR*Cout, N*H*W)      col = n*H*W + i*W + j  (pixel-shuffle done in wrapper)
    """
    cout = g_ref.shape[0]
    w = w_ref[...]                                        # (32, 4), tiny

    # ReLU + MXU contraction at input resolution, one matmul per batch image.
    cols = []
    for n in range(N):
        xr = jnp.maximum(x_ref[n], 0.0)                   # fused nn.ReLU(True), (Cin, H*W)
        cols.append(jnp.dot(w, xr, preferred_element_type=jnp.float32))  # (32, H*W)
    acc = jnp.concatenate(cols, axis=1)                   # (32, N*H*W) lane-dense

    # BatchNorm2d with training-mode batch statistics (biased variance).
    # Rows {co, co+Cout, co+2Cout, co+3Cout} x all cols hold exactly channel co's outputs.
    # (conv bias omitted: per-channel constant cancels exactly under batch-stat BN.)
    inv_cnt = 1.0 / float(KK * N * HW)
    rs = jnp.sum(acc, axis=1, keepdims=True)              # (32, 1) lane reduction
    ch_sum = rs[0:cout] + rs[cout:2 * cout] + rs[2 * cout:3 * cout] + rs[3 * cout:4 * cout]
    mean_c = ch_sum * inv_cnt                             # (Cout, 1)
    mean_row = jnp.concatenate([mean_c] * KK, axis=0)     # (32, 1)

    d = acc - mean_row
    ss = jnp.sum(d * d, axis=1, keepdims=True)            # (32, 1)
    ch_ss = ss[0:cout] + ss[cout:2 * cout] + ss[2 * cout:3 * cout] + ss[3 * cout:4 * cout]
    var_c = ch_ss * inv_cnt                               # (Cout, 1)

    scale_c = g_ref[...] * lax.rsqrt(var_c + BN_EPS)      # (Cout, 1), EUP rsqrt
    scale_row = jnp.concatenate([scale_c] * KK, axis=0)   # (32, 1)
    beta_row = jnp.concatenate([b_ref[...]] * KK, axis=0) # (32, 1)

    # Single unmasked lane-dense store (512 = 4*128 lanes).
    o_ref[...] = d * scale_row + beta_row


def fused_upsample_call(x3, w32, gamma, beta):
    return pl.pallas_call(
        _fused_upsample_kernel,
        out_shape=jax.ShapeDtypeStruct((KK * OUT_CHANNELS, N * HW), jnp.float32),
        # no grid / BlockSpecs: whole arrays (<0.2 MB) in VMEM, no grid-loop setup overhead
    )(x3, w32, gamma, beta)


# ---------------- wrapper: upsample_0.forward ------------------------------------------------
def upsample_0_forward(x, wt, conv_b, bn_gamma, bn_beta):
    """x: NCHW float32. wt: ConvTranspose2d weight [Cin, Cout, kr, kr].
    conv_b accepted for API parity but unused: BN batch statistics cancel it exactly."""
    del conv_b
    n, cin, h, w = x.shape
    cout = wt.shape[1]

    # free row-major view, no XLA transpose of the activation
    x3 = x.reshape(n, cin, h * w)
    # weight glue (<1 KB): (Cin, Cout, KR, KR) -> (KR*KR*Cout, Cin), row = (k*KR + l)*Cout + co
    w32 = jnp.transpose(wt, (2, 3, 1, 0)).reshape(KK * cout, cin)

    out32 = fused_upsample_call(
        x3, w32,
        bn_gamma.reshape(cout, 1).astype(jnp.float32),
        bn_beta.reshape(cout, 1).astype(jnp.float32),
    )

    # TODO(synk): drop_out > 0 (training-mode nn.Dropout) would need pltpu PRNG masking;
    #             not needed for drop_out=0 (Identity).
    # 2x2 pixel-shuffle of the 64 KB normalized result (wrapper-side XLA transpose, noise):
    # out32[(k*KR+l)*Cout+co, n*HW + i*W + j] -> y[n, co, i*KR+k, j*KR+l]
    y6 = out32.reshape(KR, KR, cout, n, h, w)
    y = jnp.transpose(y6, (3, 2, 4, 0, 5, 1)).reshape(n, cout, h * KR, w * KR)
    return y


# ---------------- pure-JAX reference for verification ---------------------------------------
def reference_forward(x, wt, conv_b, bn_gamma, bn_beta):
    xr = jnp.maximum(x, 0.0)
    # out[n, co, i*kr+k, j*kr+l] = sum_c xr[n,c,i,j] * wt[c,co,k,l]   (s=kr, p=0)
    y = jnp.einsum("ncij,cokl->noikjl", xr, wt)
    y = y.reshape(x.shape[0], wt.shape[1], HOUT, WOUT)
    y = y + conv_b[None, :, None, None]
    mean = jnp.mean(y, axis=(0, 2, 3), keepdims=True)
    var = jnp.mean((y - mean) ** 2, axis=(0, 2, 3), keepdims=True)
    yn = (y - mean) * lax.rsqrt(var + BN_EPS)
    return yn * bn_gamma[None, :, None, None] + bn_beta[None, :, None, None]


if __name__ == "__main__":
    key = jax.random.PRNGKey(0)
    kx, kw, kb, kg, kbeta = jax.random.split(key, 5)

    x = jax.random.normal(kx, (N, IN_CHANNELS, H, W), dtype=jnp.float32)
    # ConvTranspose2d weight: [in_channels, out_channels, kr, kr]
    wt = 0.1 * jax.random.normal(kw, (IN_CHANNELS, OUT_CHANNELS, KR, KR), dtype=jnp.float32)
    conv_b = 0.05 * jax.random.normal(kb, (OUT_CHANNELS,), dtype=jnp.float32)
    bn_gamma = 1.0 + 0.2 * jax.random.normal(kg, (OUT_CHANNELS,), dtype=jnp.float32)
    bn_beta = 0.1 * jax.random.normal(kbeta, (OUT_CHANNELS,), dtype=jnp.float32)

    out = upsample_0_forward(x, wt, conv_b, bn_gamma, bn_beta)
    out = jax.block_until_ready(out)

    ref = reference_forward(x, wt, conv_b, bn_gamma, bn_beta)
    assert out.shape == (N, OUT_CHANNELS, HOUT, WOUT), out.shape
    assert jnp.allclose(out, ref, atol=1e-4, rtol=1e-4), float(jnp.max(jnp.abs(out - ref)))

    print("KERNEL_OK")
</pallas_src>

<mosaic_0001>
module attributes {stable_mosaic.version = 11 : i64} {
  func.func @_fused_upsample_kernel(%arg0: memref<2x4x256xf32, #tpu.memory_space<vmem>>, %arg1: memref<32x4xf32, #tpu.memory_space<vmem>>, %arg2: memref<8x1xf32, #tpu.memory_space<vmem>>, %arg3: memref<8x1xf32, #tpu.memory_space<vmem>>, %arg4: memref<32x512xf32, #tpu.memory_space<vmem>>) attributes {dimension_semantics = [], scalar_prefetch = 0 : i64, scratch_operands = 0 : i64, tpu.core_type = #tpu.core_type<tc>} {
    %c0 = arith.constant 0 : index
    %c0_0 = arith.constant 0 : index
    %0 = vector.load %arg1[%c0, %c0_0] : memref<32x4xf32, #tpu.memory_space<vmem>>, vector<32x4xf32>
    %c0_1 = arith.constant 0 : index
    %c0_2 = arith.constant 0 : index
    %c0_3 = arith.constant 0 : index
    %1 = vector.load %arg0[%c0_1, %c0_2, %c0_3] : memref<2x4x256xf32, #tpu.memory_space<vmem>>, vector<1x4x256xf32>
    %2 = vector.shape_cast %1 : vector<1x4x256xf32> to vector<4x256xf32>
    %cst = arith.constant 0.000000e+00 : f32
    %3 = vector.broadcast %cst : f32 to vector<4x256xf32>
    %4 = arith.maximumf %2, %3 : vector<4x256xf32>
    %cst_4 = arith.constant dense<0.000000e+00> : vector<32x256xf32>
    %5 = tpu.matmul %0, %4, %cst_4 {dimension_numbers = #tpu.dot_dimension_numbers<[1], [0], [0], [1], [0, 0, 1, 1], [], []>} : vector<32x4xf32>, vector<4x256xf32>, vector<32x256xf32> -> vector<32x256xf32>
    %c1 = arith.constant 1 : index
    %c0_5 = arith.constant 0 : index
    %c0_6 = arith.constant 0 : index
    %6 = vector.load %arg0[%c1, %c0_5, %c0_6] : memref<2x4x256xf32, #tpu.memory_space<vmem>>, vector<1x4x256xf32>
    %7 = vector.shape_cast %6 : vector<1x4x256xf32> to vector<4x256xf32>
    %cst_7 = arith.constant 0.000000e+00 : f32
    %8 = vector.broadcast %cst_7 : f32 to vector<4x256xf32>
    %9 = arith.maximumf %7, %8 : vector<4x256xf32>
    %cst_8 = arith.constant dense<0.000000e+00> : vector<32x256xf32>
    %10 = tpu.matmul %0, %9, %cst_8 {dimension_numbers = #tpu.dot_dimension_numbers<[1], [0], [0], [1], [0, 0, 1, 1], [], []>} : vector<32x4xf32>, vector<4x256xf32>, vector<32x256xf32> -> vector<32x256xf32>
    %11 = tpu.concatenate %5, %10 in 1 : vector<32x256xf32>, vector<32x256xf32> -> vector<32x512xf32>
    %cst_9 = arith.constant dense<0.000000e+00> : vector<32xf32>
    %12 = vector.multi_reduction <add>, %11, %cst_9 [1] : vector<32x512xf32> to vector<32xf32>
    %13 = vector.shape_cast %12 : vector<32xf32> to vector<32x1xf32>
    %14 = vector.extract_strided_slice %13 {offsets = [0, 0], sizes = [8, 1], strides = [1, 1]} : vector<32x1xf32> to vector<8x1xf32>
    %15 = vector.extract_strided_slice %13 {offsets = [8, 0], sizes = [8, 1], strides = [1, 1]} : vector<32x1xf32> to vector<8x1xf32>
    %16 = arith.addf %14, %15 : vector<8x1xf32>
    %17 = vector.extract_strided_slice %13 {offsets = [16, 0], sizes = [8, 1], strides = [1, 1]} : vector<32x1xf32> to vector<8x1xf32>
    %18 = arith.addf %16, %17 : vector<8x1xf32>
    %19 = vector.extract_strided_slice %13 {offsets = [24, 0], sizes = [8, 1], strides = [1, 1]} : vector<32x1xf32> to vector<8x1xf32>
    %20 = arith.addf %18, %19 : vector<8x1xf32>
    %cst_10 = arith.constant 4.8828125E-4 : f32
    %21 = vector.broadcast %cst_10 : f32 to vector<8x1xf32>
    %22 = arith.mulf %20, %21 : vector<8x1xf32>
    %23 = tpu.concatenate %22, %22, %22, %22 in 0 : vector<8x1xf32>, vector<8x1xf32>, vector<8x1xf32>, vector<8x1xf32> -> vector<32x1xf32>
    %24 = vector.broadcast %23 : vector<32x1xf32> to vector<32x512xf32>
    %25 = arith.subf %11, %24 : vector<32x512xf32>
    %26 = arith.mulf %25, %25 : vector<32x512xf32>
    %cst_11 = arith.constant dense<0.000000e+00> : vector<32xf32>
    %27 = vector.multi_reduction <add>, %26, %cst_11 [1] : vector<32x512xf32> to vector<32xf32>
    %28 = vector.shape_cast %27 : vector<32xf32> to vector<32x1xf32>
    %29 = vector.extract_strided_slice %28 {offsets = [0, 0], sizes = [8, 1], strides = [1, 1]} : vector<32x1xf32> to vector<8x1xf32>
    %30 = vector.extract_strided_slice %28 {offsets = [8, 0], sizes = [8, 1], strides = [1, 1]} : vector<32x1xf32> to vector<8x1xf32>
    %31 = arith.addf %29, %30 : vector<8x1xf32>
    %32 = vector.extract_strided_slice %28 {offsets = [16, 0], sizes = [8, 1], strides = [1, 1]} : vector<32x1xf32> to vector<8x1xf32>
    %33 = arith.addf %31, %32 : vector<8x1xf32>
    %34 = vector.extract_strided_slice %28 {offsets = [24, 0], sizes = [8, 1], strides = [1, 1]} : vector<32x1xf32> to vector<8x1xf32>
    %35 = arith.addf %33, %34 : vector<8x1xf32>
    %cst_12 = arith.constant 4.8828125E-4 : f32
    %36 = vector.broadcast %cst_12 : f32 to vector<8x1xf32>
    %37 = arith.mulf %35, %36 : vector<8x1xf32>
    %c0_13 = arith.constant 0 : index
    %c0_14 = arith.constant 0 : index
    %38 = vector.load %arg2[%c0_13, %c0_14] : memref<8x1xf32, #tpu.memory_space<vmem>>, vector<8x1xf32>
    %cst_15 = arith.constant 9.99999974E-6 : f32
    %39 = vector.broadcast %cst_15 : f32 to vector<8x1xf32>
    %40 = arith.addf %37, %39 : vector<8x1xf32>
    %41 = math.rsqrt %40 : vector<8x1xf32>
    %42 = arith.mulf %38, %41 : vector<8x1xf32>
    %43 = tpu.concatenate %42, %42, %42, %42 in 0 : vector<8x1xf32>, vector<8x1xf32>, vector<8x1xf32>, vector<8x1xf32> -> vector<32x1xf32>
    %c0_16 = arith.constant 0 : index
    %c0_17 = arith.constant 0 : index
    %44 = vector.load %arg3[%c0_16, %c0_17] : memref<8x1xf32, #tpu.memory_space<vmem>>, vector<8x1xf32>
    %45 = tpu.concatenate %44, %44, %44, %44 in 0 : vector<8x1xf32>, vector<8x1xf32>, vector<8x1xf32>, vector<8x1xf32> -> vector<32x1xf32>
    %46 = vector.broadcast %43 : vector<32x1xf32> to vector<32x512xf32>
    %47 = arith.mulf %25, %46 : vector<32x512xf32>
    %48 = vector.broadcast %45 : vector<32x1xf32> to vector<32x512xf32>
    %49 = arith.addf %47, %48 : vector<32x512xf32>
    %c0_18 = arith.constant 0 : index
    %c0_19 = arith.constant 0 : index
    %50 = vector.load %arg4[%c0_18, %c0_19] : memref<32x512xf32, #tpu.memory_space<vmem>>, vector<32x512xf32>
    tpu.vector_store %arg4[%c0_18, %c0_19], %49 {strides = array<i32>} : memref<32x512xf32, #tpu.memory_space<vmem>>, vector<32x512xf32>,
    return
  }
}

</mosaic_0001>

<llo_original>
// kernel: tpu_custom_call.1
$region0: #{tpu_custom_call.1}
  #allocation0 [shape = 'u32[]', space=smem, size = 0x4, offset = 0x4, fixed_abs, tag = 'smem constant byte address 0x4 - core index']
  #allocation1 [shape = 'u32[144,128]{1,0:T(1,128)}', space=vmem, size = 0x12000, scoped, tag = 'internal scratch']
  %s0 = inlined_call_operand.vmem [shape: f32[2,4,256], index: 0, kind: input, shape index: {}]
  %s1 = inlined_call_operand.vmem [shape: f32[32,4], index: 1, kind: input, shape index: {}]
  %s2 = inlined_call_operand.vmem [shape: f32[8,1], index: 2, kind: input, shape index: {}]
  %s3 = inlined_call_operand.vmem [shape: f32[8,1], index: 3, kind: input, shape index: {}]
  %s4 = inlined_call_operand.hbm [shape: f32[32,512], index: 4, kind: output, shape index: {}]
  %s5 = sld [smem:[#allocation0]]
  $region26: #{tpu_custom_call.1} parent=0
    _
  %s7 = ssub.s32 1, %s5
  %s8 = scalar_select 0, %s7, %s5
  $region1: #{tpu_custom_call.1} parent=0
    #allocation2 [shape = 'u8[65536]{0}', space=vmem, size = 0x10000, scoped, tag = 'output window, operand 0, single buffered']
    #allocation3 [shape = 's32[1]{0}', space=sflag, size = 0x4, scoped, tag = 'scoped memory for tpu_custom_call.1']
    %9 = vsyncpa [#allocation3], 0
    // Predicated region
    $region2: #{tpu_custom_call.1} parent=1 // pred_check
      _
    $region3: #{tpu_custom_call.1} parent=1 // pred_check_branch
      %11 = sbr.rel (0) target = $region5
    $region4: #{tpu_custom_call.1} parent=1 // pred_region
      _
    $region5: #{tpu_custom_call.1} parent=1 // pred_fallthru
      _
    // Predicated region
    $region6: #{tpu_custom_call.1} parent=1 // pred_check
      _
    $region7: #{tpu_custom_call.1} parent=1 // pred_check_branch
      %13 = sbr.rel (0) target = $region9
    $region8: #{tpu_custom_call.1} parent=1 // pred_region
      _
    $region9: #{tpu_custom_call.1} parent=1 // pred_fallthru
      _
    // Predicated region
    $region10: #{tpu_custom_call.1} parent=1 // pred_check
      _
    $region11: #{tpu_custom_call.1} parent=1 // pred_check_branch
      %15 = sbr.rel (0) target = $region13
    $region12: #{tpu_custom_call.1} parent=1 // pred_region
      _
    $region13: #{tpu_custom_call.1} parent=1 // pred_fallthru
      _
    // Predicated region
    $region14: #{tpu_custom_call.1} parent=1 // pred_check
      _
    $region15: #{tpu_custom_call.1} parent=1 // pred_check_branch
      %17 = sbr.rel (0) target = $region17
    $region16: #{tpu_custom_call.1} parent=1 // pred_region
      _
    $region17: #{tpu_custom_call.1} parent=1 // pred_fallthru
      _
    %v18 = vld [vmem:[%s1] sm:$0xff]
    %v19 = vld [vmem:[%s1 + $0x8] sm:$0xff]
    %v20 = vld [vmem:[%s1 + $0x10] sm:$0xff]
    %v21 = vld [vmem:[%s1 + $0x18] sm:$0xff]
    %v22 = vld [vmem:[%s0] sm:$0xff]
    %v23 = vmax.f32 %v22, 0.0
    %v25 = vcombine.high %v23, %v23
    %vm26 = vcmask 31744
    %v28 = vsel %vm26, %v18, 0
    %v31 = vsel %vm26, %v19, 0
    %v34 = vsel %vm26, %v20, 0
    %v37 = vsel %vm26, %v21, 0
    %vm39 = vcmask 1043456
    %v40 = vsel %vm39, %v23, 0
    %v42 = vsel %vm39, %v25, 0
    %44 = vmatprep.subr.mxu0 %v42
    %45 = vmatpush1.msra.mxu0 %v40
    %46 = vmatprep.subr.mxu0 0.0
    %47 = vmatpush1.msra.mxu0 0.0
    %48 = vmatprep.subr.mxu0 0.0
    %49 = vmatpush1.msra.mxu0 0.0
    %50 = vmatprep.subr.mxu0 0.0
    %51 = vmatpush1.msra.mxu0 0.0
    %52 = vmatprep.subr.mxu0 0.0
    %53 = vmatpush1.msra.mxu0 0.0
    %54 = vmatprep.subr.mxu0 0.0
    %55 = vmatpush1.msra.mxu0 0.0
    %56 = vmatprep.subr.mxu0 0.0
    %57 = vmatpush1.msra.mxu0 0.0
    %58 = vmatprep.subr.mxu0 0.0
    %59 = vmatpush1.msra.mxu0 0.0
    %60 = vmatprep.subr.mxu0 0.0
    %61 = vmatpush1.msra.mxu0 0.0
    %62 = vmatprep.subr.mxu0 0.0
    %63 = vmatpush1.msra.mxu0 0.0
    %64 = vmatprep.subr.mxu0 0.0
    %65 = vmatpush1.msra.mxu0 0.0
    %66 = vmatprep.subr.mxu0 0.0
    %67 = vmatpush1.msra.mxu0 0.0
    %68 = vmatprep.subr.mxu0 0.0
    %69 = vmatpush1.msra.mxu0 0.0
    %70 = vmatprep.subr.mxu0 0.0
    %71 = vmatpush1.msra.mxu0 0.0
    %72 = vmatprep.subr.mxu0 0.0
    %73 = vmatpush1.msra.mxu0 0.0
    %74 = vmatprep.subr.mxu0 0.0
    %75 = vmatpush1.msra.mxu0 0.0
    %76 = vmatprep.subr.mxu0 0.0
    %77 = vmatpush1.msra.mxu0 0.0
    %78 = vmatprep.subr.mxu0 0.0
    %79 = vmatpush1.msra.mxu0 0.0
    %80 = vmatprep.subr.mxu0 0.0
    %81 = vmatpush1.msra.mxu0 0.0
    %82 = vmatprep.subr.mxu0 0.0
    %83 = vmatpush1.msra.mxu0 0.0
    %84 = vmatprep.subr.mxu0 0.0
    %85 = vmatpush1.msra.mxu0 0.0
    %86 = vmatprep.subr.mxu0 0.0
    %87 = vmatpush1.msra.mxu0 0.0
    %88 = vmatprep.subr.mxu0 0.0
    %89 = vmatpush1.msra.mxu0 0.0
    %90 = vmatprep.subr.mxu0 0.0
    %91 = vmatpush1.msra.mxu0 0.0
    %92 = vmatprep.subr.mxu0 0.0
    %93 = vmatpush1.msra.mxu0 0.0
    %94 = vmatprep.subr.mxu0 0.0
    %95 = vmatpush1.msra.mxu0 0.0
    %96 = vmatprep.subr.mxu0 0.0
    %97 = vmatpush1.msra.mxu0 0.0
    %98 = vmatprep.subr.mxu0 0.0
    %99 = vmatpush1.msra.mxu0 0.0
    %100 = vmatprep.subr.mxu0 0.0
    %101 = vmatpush1.msra.mxu0 0.0
    %102 = vmatprep.subr.mxu0 0.0
    %103 = vmatpush1.msra.mxu0 0.0
    %104 = vmatprep.subr.mxu0 0.0
    %105 = vmatpush1.msra.mxu0 0.0
    %106 = vmatprep.subr.mxu0 0.0
    %107 = vmatpush1.msra.mxu0 0.0
    %108 = vmatprep.mubr.f32.mxu0 0.0
    %109 = vmatmul.mubr.f32.gmra.mrb[0].mxu0 %v28
    %v110 = vpop.f32.mrb[0].mxu0
    %v111 = vadd.f32 0.0, %v110
    %v112 = vpop.f32.mrb[0].mxu0
    %v113 = vadd.f32 0.0, %v112
    %114 = vmatprep.mubr.f32.mxu0 0.0
    %115 = vmatmul.mubr.f32.gmra.mrb[0].mxu0 %v31
    %v116 = vpop.f32.mrb[0].mxu0
    %v117 = vadd.f32 0.0, %v116
    %v118 = vpop.f32.mrb[0].mxu0
    %v119 = vadd.f32 0.0, %v118
    %120 = vmatprep.mubr.f32.mxu0 0.0
    %121 = vmatmul.mubr.f32.gmra.mrb[0].mxu0 %v34
    %v122 = vpop.f32.mrb[0].mxu0
    %v123 = vadd.f32 0.0, %v122
    %v124 = vpop.f32.mrb[0].mxu0
    %v125 = vadd.f32 0.0, %v124
    %126 = vmatprep.mubr.f32.mxu0 0.0
    %127 = vmatmul.mubr.f32.gmra.mrb[0].mxu0 %v37
    %v128 = vpop.f32.mrb[0].mxu0
    %v129 = vadd.f32 0.0, %v128
    %v130 = vpop.f32.mrb[0].mxu0
    %v131 = vadd.f32 0.0, %v130
    %132 = vdwg.mxu0
    %s133 = scalar_lea.vmem %s0, 8
    %v134 = vld [vmem:[%s133] sm:$0xff]
    %v135 = vmax.f32 %v134, 0.0
    %v137 = vcombine.high %v135, %v135
    %v138 = vsel %vm39, %v135, 0
    %v140 = vsel %vm39, %v137, 0
    %142 = vmatprep.subr.mxu0 %v140
    %143 = vmatpush1.msra.mxu0 %v138
    %144 = vmatprep.subr.mxu0 0.0
    %145 = vmatpush1.msra.mxu0 0.0
    %146 = vmatprep.subr.mxu0 0.0
    %147 = vmatpush1.msra.mxu0 0.0
    %148 = vmatprep.subr.mxu0 0.0
    %149 = vmatpush1.msra.mxu0 0.0
    %150 = vmatprep.subr.mxu0 0.0
    %151 = vmatpush1.msra.mxu0 0.0
    %152 = vmatprep.subr.mxu0 0.0
    %153 = vmatpush1.msra.mxu0 0.0
    %154 = vmatprep.subr.mxu0 0.0
    %155 = vmatpush1.msra.mxu0 0.0
    %156 = vmatprep.subr.mxu0 0.0
    %157 = vmatpush1.msra.mxu0 0.0
    %158 = vmatprep.subr.mxu0 0.0
    %159 = vmatpush1.msra.mxu0 0.0
    %160 = vmatprep.subr.mxu0 0.0
    %161 = vmatpush1.msra.mxu0 0.0
    %162 = vmatprep.subr.mxu0 0.0
    %163 = vmatpush1.msra.mxu0 0.0
    %164 = vmatprep.subr.mxu0 0.0
    %165 = vmatpush1.msra.mxu0 0.0
    %166 = vmatprep.subr.mxu0 0.0
    %167 = vmatpush1.msra.mxu0 0.0
    %168 = vmatprep.subr.mxu0 0.0
    %169 = vmatpush1.msra.mxu0 0.0
    %170 = vmatprep.subr.mxu0 0.0
    %171 = vmatpush1.msra.mxu0 0.0
    %172 = vmatprep.subr.mxu0 0.0
    %173 = vmatpush1.msra.mxu0 0.0
    %174 = vmatprep.subr.mxu0 0.0
    %175 = vmatpush1.msra.mxu0 0.0
    %176 = vmatprep.subr.mxu0 0.0
    %177 = vmatpush1.msra.mxu0 0.0
    %178 = vmatprep.subr.mxu0 0.0
    %179 = vmatpush1.msra.mxu0 0.0
    %180 = vmatprep.subr.mxu0 0.0
    %181 = vmatpush1.msra.mxu0 0.0
    %182 = vmatprep.subr.mxu0 0.0
    %183 = vmatpush1.msra.mxu0 0.0
    %184 = vmatprep.subr.mxu0 0.0
    %185 = vmatpush1.msra.mxu0 0.0
    %186 = vmatprep.subr.mxu0 0.0
    %187 = vmatpush1.msra.mxu0 0.0
    %188 = vmatprep.subr.mxu0 0.0
    %189 = vmatpush1.msra.mxu0 0.0
    %190 = vmatprep.subr.mxu0 0.0
    %191 = vmatpush1.msra.mxu0 0.0
    %192 = vmatprep.subr.mxu0 0.0
    %193 = vmatpush1.msra.mxu0 0.0
    %194 = vmatprep.subr.mxu0 0.0
    %195 = vmatpush1.msra.mxu0 0.0
    %196 = vmatprep.subr.mxu0 0.0
    %197 = vmatpush1.msra.mxu0 0.0
    %198 = vmatprep.subr.mxu0 0.0
    %199 = vmatpush1.msra.mxu0 0.0
    %200 = vmatprep.subr.mxu0 0.0
    %201 = vmatpush1.msra.mxu0 0.0
    %202 = vmatprep.subr.mxu0 0.0
    %203 = vmatpush1.msra.mxu0 0.0
    %204 = vmatprep.subr.mxu0 0.0
    %205 = vmatpush1.msra.mxu0 0.0
    %206 = vmatprep.mubr.f32.mxu0 0.0
    %207 = vmatmul.mubr.f32.gmra.mrb[0].mxu0 %v28
    %v208 = vpop.f32.mrb[0].mxu0
    %v209 = vadd.f32 0.0, %v208
    %v210 = vpop.f32.mrb[0].mxu0
    %v211 = vadd.f32 0.0, %v210
    %212 = vmatprep.mubr.f32.mxu0 0.0
    %213 = vmatmul.mubr.f32.gmra.mrb[0].mxu0 %v31
    %v214 = vpop.f32.mrb[0].mxu0
    %v215 = vadd.f32 0.0, %v214
    %v216 = vpop.f32.mrb[0].mxu0
    %v217 = vadd.f32 0.0, %v216
    %218 = vmatprep.mubr.f32.mxu0 0.0
    %219 = vmatmul.mubr.f32.gmra.mrb[0].mxu0 %v34
    %v220 = vpop.f32.mrb[0].mxu0
    %v221 = vadd.f32 0.0, %v220
    %v222 = vpop.f32.mrb[0].mxu0
    %v223 = vadd.f32 0.0, %v222
    %224 = vmatprep.mubr.f32.mxu0 0.0
    %225 = vmatmul.mubr.f32.gmra.mrb[0].mxu0 %v37
    %v226 = vpop.f32.mrb[0].mxu0
    %v227 = vadd.f32 0.0, %v226
    %v228 = vpop.f32.mrb[0].mxu0
    %v229 = vadd.f32 0.0, %v228
    %230 = vdwg.mxu0
    %v231 = vadd.f32 %v111, %v113
    %v232 = vadd.f32 %v231, %v209
    %v233 = vadd.f32 %v232, %v211
    %234 = vadd.xlane.f32.xlu0 %v233
    %v235 = vpop.xlane.xlu0 %234
    %v236 = vadd.f32 %v117, %v119
    %v237 = vadd.f32 %v236, %v215
    %v238 = vadd.f32 %v237, %v217
    %239 = vadd.xlane.f32.xlu0 %v238
    %v240 = vpop.xlane.xlu0 %239
    %v241 = vadd.f32 %v123, %v125
    %v242 = vadd.f32 %v241, %v221
    %v243 = vadd.f32 %v242, %v223
    %244 = vadd.xlane.f32.xlu0 %v243
    %v245 = vpop.xlane.xlu0 %244
    %v246 = vadd.f32 %v129, %v131
    %v247 = vadd.f32 %v246, %v227
    %v248 = vadd.f32 %v247, %v229
    %249 = vadd.xlane.f32.xlu0 %v248
    %v250 = vpop.xlane.xlu0 %249
    %v251 = vadd.f32 %v235, %v240
    %v252 = vadd.f32 %v251, %v245
    %v253 = vadd.f32 %v252, %v250
    %v254 = vmul.f32 %v253, 0.00048828125
    %256 = vset.pattern.permute.xlu0 0
    %257 = vperm.xlu0 %256, %v254
    %v258 = vpop.permute.xlu0 %257
    %v260 = vsub.f32 %v111, %v258
    %v261 = vsub.f32 %v113, %v258
    %v262 = vsub.f32 %v209, %v258
    %v263 = vsub.f32 %v211, %v258
    %v264 = vsub.f32 %v117, %v258
    %v265 = vsub.f32 %v119, %v258
    %v266 = vsub.f32 %v215, %v258
    %v267 = vsub.f32 %v217, %v258
    %v268 = vsub.f32 %v123, %v258
    %v269 = vsub.f32 %v125, %v258
    %v270 = vsub.f32 %v221, %v258
    %v271 = vsub.f32 %v223, %v258
    %v272 = vsub.f32 %v129, %v258
    %v273 = vsub.f32 %v131, %v258
    %v274 = vsub.f32 %v227, %v258
    %v275 = vsub.f32 %v229, %v258
    %v276 = vmul.f32 %v260, %v260
    %v277 = vmul.f32 %v261, %v261
    %v278 = vmul.f32 %v262, %v262
    %v279 = vmul.f32 %v263, %v263
    %v280 = vmul.f32 %v264, %v264
    %v281 = vmul.f32 %v265, %v265
    %v282 = vmul.f32 %v266, %v266
    %v283 = vmul.f32 %v267, %v267
    %v284 = vmul.f32 %v268, %v268
    %v285 = vmul.f32 %v269, %v269
    %v286 = vmul.f32 %v270, %v270
    %v287 = vmul.f32 %v271, %v271
    %v288 = vmul.f32 %v272, %v272
    %v289 = vmul.f32 %v273, %v273
    %v290 = vmul.f32 %v274, %v274
    %v291 = vmul.f32 %v275, %v275
    %v292 = vadd.f32 %v276, %v277
    %v293 = vadd.f32 %v292, %v278
    %v294 = vadd.f32 %v293, %v279
    %295 = vadd.xlane.f32.xlu0 %v294
    %v296 = vpop.xlane.xlu0 %295
    %v297 = vadd.f32 %v280, %v281
    %v298 = vadd.f32 %v297, %v282
    %v299 = vadd.f32 %v298, %v283
    %300 = vadd.xlane.f32.xlu0 %v299
    %v301 = vpop.xlane.xlu0 %300
    %v302 = vadd.f32 %v284, %v285
    %v303 = vadd.f32 %v302, %v286
    %v304 = vadd.f32 %v303, %v287
    %305 = vadd.xlane.f32.xlu0 %v304
    %v306 = vpop.xlane.xlu0 %305
    %v307 = vadd.f32 %v288, %v289
    %v308 = vadd.f32 %v307, %v290
    %v309 = vadd.f32 %v308, %v291
    %310 = vadd.xlane.f32.xlu0 %v309
    %v311 = vpop.xlane.xlu0 %310
    %v312 = vadd.f32 %v296, %v301
    %v313 = vadd.f32 %v312, %v306
    %v314 = vadd.f32 %v313, %v311
    %v315 = vmul.f32 %v314, 0.00048828125
    %v316 = vld [vmem:[%s2] sm:$0xff]
    %v317 = vadd.f32 %v315, 1e-05
    %v318 = vrsqrt.pop %v317
    %v319 = vmul.f32 %v316, %v318
    %v320 = vld [vmem:[%s3] sm:$0xff]
    %322 = vset.pattern.permute.xlu0 0
    %323 = vperm.xlu0 %322, %v319
    %v324 = vpop.permute.xlu0 %323
    %v326 = vmul.f32 %v260, %v324
    %v327 = vmul.f32 %v261, %v324
    %v328 = vmul.f32 %v262, %v324
    %v329 = vmul.f32 %v263, %v324
    %v330 = vmul.f32 %v264, %v324
    %v331 = vmul.f32 %v265, %v324
    %v332 = vmul.f32 %v266, %v324
    %v333 = vmul.f32 %v267, %v324
    %v334 = vmul.f32 %v268, %v324
    %v335 = vmul.f32 %v269, %v324
    %v336 = vmul.f32 %v270, %v324
    %v337 = vmul.f32 %v271, %v324
    %v338 = vmul.f32 %v272, %v324
    %v339 = vmul.f32 %v273, %v324
    %v340 = vmul.f32 %v274, %v324
    %v341 = vmul.f32 %v275, %v324
    %343 = vset.pattern.permute.xlu0 0
    %344 = vperm.xlu0 %343, %v320
    %v345 = vpop.permute.xlu0 %344
    %v347 = vadd.f32 %v326, %v345
    %v348 = vadd.f32 %v327, %v345
    %v349 = vadd.f32 %v328, %v345
    %v350 = vadd.f32 %v329, %v345
    %v351 = vadd.f32 %v330, %v345
    %v352 = vadd.f32 %v331, %v345
    %v353 = vadd.f32 %v332, %v345
    %v354 = vadd.f32 %v333, %v345
    %v355 = vadd.f32 %v334, %v345
    %v356 = vadd.f32 %v335, %v345
    %v357 = vadd.f32 %v336, %v345
    %v358 = vadd.f32 %v337, %v345
    %v359 = vadd.f32 %v338, %v345
    %v360 = vadd.f32 %v339, %v345
    %v361 = vadd.f32 %v340, %v345
    %v362 = vadd.f32 %v341, %v345
    %363 = vst [vmem:[#allocation2] sm:$0xff] %v347
    %364 = vst [vmem:[#allocation2 + $0x8] sm:$0xff] %v348
    %365 = vst [vmem:[#allocation2 + $0x10] sm:$0xff] %v349
    %366 = vst [vmem:[#allocation2 + $0x18] sm:$0xff] %v350
    %367 = vst [vmem:[#allocation2 + $0x20] sm:$0xff] %v351
    %368 = vst [vmem:[#allocation2 + $0x28] sm:$0xff] %v352
    %369 = vst [vmem:[#allocation2 + $0x30] sm:$0xff] %v353
    %370 = vst [vmem:[#allocation2 + $0x38] sm:$0xff] %v354
    %371 = vst [vmem:[#allocation2 + $0x40] sm:$0xff] %v355
    %372 = vst [vmem:[#allocation2 + $0x48] sm:$0xff] %v356
    %373 = vst [vmem:[#allocation2 + $0x50] sm:$0xff] %v357
    %374 = vst [vmem:[#allocation2 + $0x58] sm:$0xff] %v358
    %375 = vst [vmem:[#allocation2 + $0x60] sm:$0xff] %v359
    %376 = vst [vmem:[#allocation2 + $0x68] sm:$0xff] %v360
    %377 = vst [vmem:[#allocation2 + $0x70] sm:$0xff] %v361
    %378 = vst [vmem:[#allocation2 + $0x78] sm:$0xff] %v362
    // Predicated region
    $region18: #{tpu_custom_call.1} parent=1 // pred_check
      _
    $region19: #{tpu_custom_call.1} parent=1 // pred_check_branch
      %380 = sbr.rel (0) target = $region21
    $region20: #{tpu_custom_call.1} parent=1 // pred_region
      %s382 = ssub.s32 2048, 2048
      %383 = vsyncadd [#allocation3], %s382
      %s384 = sshll.u32 [#allocation2], 4
      %s385 = int_to_ptr.vmem [resolvable:$true] %s384
      %390 = dma.vmem_to_hbm [thread:$0]  %s385, 2048, %s4, [#allocation3], 512, 512, 32
    $region21: #{tpu_custom_call.1} parent=1 // pred_fallthru
      _
    // Predicated region
    $region22: #{tpu_custom_call.1} parent=1 // pred_check
      _
    $region23: #{tpu_custom_call.1} parent=1 // pred_check_branch
      %392 = sbr.rel (0) target = $region25
    $region24: #{tpu_custom_call.1} parent=1 // pred_region
      %393 = dma.done [#allocation3], 2048
    $region25: #{tpu_custom_call.1} parent=1 // pred_fallthru
      _
    %394 = vsyncpa [#allocation3], 1

</llo_original>
